<compile_context>
chip_gen: v7x
topology: tpu7x:2x2x1
jax: 0.10.0
libtpu: 0.0.40
codegen_flags: <defaults>
</compile_context>

<pallas_src>
import math

import jax
import jax.numpy as jnp
import numpy as np
from jax.experimental import pallas as pl
from jax.experimental.pallas import tpu as pltpu


# ----------------------------------------------------------------------------
# Pallas kernel: whole forward pass in one invocation (no grid, no scratch).
# ----------------------------------------------------------------------------
def _token_module_kernel(
    xcol_ref,          # (3C, B*L)        bf16  conv1 im2col (taps stacked on channels)
    w1_ref,            # (C, 3C)          bf16  conv1 weight, tap-major columns
    b1_ref,            # (C, 1)           f32
    g1_ref, be1_ref,   # (C, 1) each      f32   BN1 gamma / beta
    w2_ref,            # (C, 5C)          bf16  conv2 weight, tap-major columns
    b2_ref,            # (C, 1)           f32
    g2_ref, be2_ref,   # (C, 1) each      f32   BN2 gamma / beta
    sew_ref, sow_ref,  # (B*L, 5*B*L2)    bf16  pool1 even/odd selectors fused with conv2 tap shifts
    se2_ref, so2_ref,  # (B*L2, B*L4)     bf16  pool2 even/odd selectors
    out_ref,           # (C, B*L4)        f32
):
    f32 = jnp.float32
    bf16 = jnp.bfloat16
    eps = f32(1e-5)

    C = w1_ref.shape[0]
    BL = xcol_ref.shape[1]
    BL2 = se2_ref.shape[0]
    ntap2 = w2_ref.shape[1] // C

    # ---------------- Stage 1: Conv1d(k=3, pad=1) — one im2col matmul ------
    y1 = jnp.dot(w1_ref[...], xcol_ref[...], preferred_element_type=f32)
    y1 = y1 + b1_ref[...]                               # (C, B*L)

    # ---------------- BatchNorm1 (training-mode batch stats) + ReLU --------
    inv_n1 = f32(1.0 / BL)
    mean1 = jnp.sum(y1, axis=1, keepdims=True) * inv_n1
    var1 = jnp.sum(y1 * y1, axis=1, keepdims=True) * inv_n1 - mean1 * mean1
    y1 = (y1 - mean1) * jax.lax.rsqrt(var1 + eps) * g1_ref[...] + be1_ref[...]
    y1 = jnp.maximum(y1, f32(0.0)).astype(bf16)

    # ------ MaxPool1d(2) fused with conv2 tap shifts: two wide matmuls -----
    # p_wide[:, k*B*L2 + b*L2 + j] = pooled[:, b, j + k - 2]   (0 outside range)
    p_wide = jnp.maximum(
        jnp.dot(y1, sew_ref[...], preferred_element_type=f32),
        jnp.dot(y1, sow_ref[...], preferred_element_type=f32),
    ).astype(bf16)                                      # (C, 5*B*L2)

    # ---------------- Stage 2: Conv1d(k=5, pad=2) --------------------------
    w2 = w2_ref[...]
    y2 = b2_ref[...]                                    # bias as start value
    for k in range(ntap2):
        y2 = y2 + jnp.dot(
            w2[:, k * C:(k + 1) * C],
            p_wide[:, k * BL2:(k + 1) * BL2],
            preferred_element_type=f32,
        )                                               # (C, B*L2)

    # ---------------- BatchNorm2 + ReLU -------------------------------------
    inv_n2 = f32(1.0 / BL2)
    mean2 = jnp.sum(y2, axis=1, keepdims=True) * inv_n2
    var2 = jnp.sum(y2 * y2, axis=1, keepdims=True) * inv_n2 - mean2 * mean2
    y2 = (y2 - mean2) * jax.lax.rsqrt(var2 + eps) * g2_ref[...] + be2_ref[...]
    y2 = jnp.maximum(y2, f32(0.0)).astype(bf16)

    # ---------------- MaxPool1d(2) -> single lane-contiguous store ----------
    out_ref[...] = jnp.maximum(
        jnp.dot(y2, se2_ref[...], preferred_element_type=f32),
        jnp.dot(y2, so2_ref[...], preferred_element_type=f32),
    ).astype(out_ref.dtype)


# ----------------------------------------------------------------------------
# Wrapper: parameter/selector plumbing (glue) + pallas_call
# ----------------------------------------------------------------------------
def _pool_tap_selectors(B, L, ntap, pad):
    """Even/odd selector matrices for MaxPool1d(2) fused with the tap shifts
    (kernel=ntap, padding=pad) of a following conv.

    Shape (B*L, ntap*B*(L//2)); column (k, b, j) picks pooled element
    (b, j + k - pad) (even / odd source respectively) or is all-zero when the
    shifted index falls in the conv padding region.
    """
    L2 = L // 2
    se = np.zeros((B * L, ntap * B * L2), np.float32)
    so = np.zeros((B * L, ntap * B * L2), np.float32)
    for k in range(ntap):
        for b in range(B):
            for j in range(L2):
                p = j + k - pad
                if 0 <= p < L2:
                    col = k * B * L2 + b * L2 + j
                    se[b * L + 2 * p, col] = 1.0
                    so[b * L + 2 * p + 1, col] = 1.0
    return se, so


def init_params(seq_len, key):
    """Deterministic parameters with PyTorch-default-like init (uniform, fan_in)."""
    C = seq_len
    k1, k2, k3, k4 = jax.random.split(key, 4)
    bound1 = 1.0 / math.sqrt(C * 3)
    bound2 = 1.0 / math.sqrt(C * 5)
    return {
        "w1": jax.random.uniform(k1, (C, C, 3), jnp.float32, -bound1, bound1),
        "b1": jax.random.uniform(k2, (C,), jnp.float32, -bound1, bound1),
        "g1": jnp.ones((C,), jnp.float32),
        "be1": jnp.zeros((C,), jnp.float32),
        "w2": jax.random.uniform(k3, (C, C, 5), jnp.float32, -bound2, bound2),
        "b2": jax.random.uniform(k4, (C,), jnp.float32, -bound2, bound2),
        "g2": jnp.ones((C,), jnp.float32),
        "be2": jnp.zeros((C,), jnp.float32),
    }


def token_module_forward(x, params):
    """x: (B, seq_len, L) float32, NCL layout. Returns (B, seq_len, L // 4)."""
    B, C, L = x.shape
    assert L % 4 == 0, "length must be divisible by 4 (two MaxPool1d(2) stages)"
    L2, L4 = L // 2, L // 4
    BL, BL2, BL4 = B * L, B * L2, B * L4

    f32, bf16 = jnp.float32, jnp.bfloat16

    # --- Glue: conv1 im2col with batch folded into the lane axis ------------
    xp = jnp.pad(x.astype(f32), ((0, 0), (0, 0), (1, 1)))            # (B, C, L+2)
    xcol = jnp.concatenate([xp[:, :, k:k + L] for k in range(3)], axis=1)  # (B, 3C, L)
    xcol = jnp.transpose(xcol, (1, 0, 2)).reshape(3 * C, BL).astype(bf16)  # (3C, B*L)

    # --- Glue: weights / BN params in kernel layout --------------------------
    w1 = jnp.transpose(params["w1"], (0, 2, 1)).reshape(C, 3 * C).astype(bf16)  # (C,3C)
    w2 = jnp.transpose(params["w2"], (0, 2, 1)).reshape(C, 5 * C).astype(bf16)  # (C,5C)
    b1 = params["b1"].reshape(C, 1).astype(f32)
    b2 = params["b2"].reshape(C, 1).astype(f32)
    g1 = params["g1"].reshape(C, 1).astype(f32)
    be1 = params["be1"].reshape(C, 1).astype(f32)
    g2 = params["g2"].reshape(C, 1).astype(f32)
    be2 = params["be2"].reshape(C, 1).astype(f32)

    # --- Glue: pooling selectors (exact 0/1 picks, built in numpy) ----------
    sew_np, sow_np = _pool_tap_selectors(B, L, ntap=5, pad=2)   # (B*L, 5*B*L2)
    se2_np, so2_np = _pool_tap_selectors(B, L2, ntap=1, pad=0)  # (B*L2, B*L4)
    sew = jnp.asarray(sew_np, bf16)
    sow = jnp.asarray(sow_np, bf16)
    se2 = jnp.asarray(se2_np, bf16)
    so2 = jnp.asarray(so2_np, bf16)

    vmem_spec = pl.BlockSpec(memory_space=pltpu.MemorySpace.VMEM)
    n_inputs = 13

    out_flat = pl.pallas_call(
        _token_module_kernel,
        out_shape=jax.ShapeDtypeStruct((C, BL4), jnp.float32),
        in_specs=[vmem_spec] * n_inputs,
        out_specs=vmem_spec,
    )(xcol, w1, b1, g1, be1, w2, b2, g2, be2, sew, sow, se2, so2)

    # Restore NCL layout: (C, B*L4) -> (B, C, L4)
    return jnp.transpose(out_flat.reshape(C, B, L4), (1, 0, 2))


# ----------------------------------------------------------------------------
# Pure-JAX f32 reference (for correctness check only)
# ----------------------------------------------------------------------------
def _reference_forward(x, params):
    def conv1d(x, w, b, pad):
        B, C, L = x.shape
        K = w.shape[-1]
        xp = jnp.pad(x, ((0, 0), (0, 0), (pad, pad)))
        out = jnp.zeros((B, w.shape[0], L), jnp.float32)
        for k in range(K):
            out = out + jnp.einsum("oc,bcl->bol", w[:, :, k], xp[:, :, k:k + L])
        return out + b[None, :, None]

    def bn_train(x, gamma, beta, eps=1e-5):
        mean = jnp.mean(x, axis=(0, 2), keepdims=True)
        var = jnp.mean((x - mean) ** 2, axis=(0, 2), keepdims=True)
        return (x - mean) / jnp.sqrt(var + eps) * gamma[None, :, None] + beta[None, :, None]

    def maxpool2(x):
        B, C, L = x.shape
        return jnp.max(x.reshape(B, C, L // 2, 2), axis=-1)

    out = conv1d(x, params["w1"], params["b1"], pad=1)
    out = jnp.maximum(bn_train(out, params["g1"], params["be1"]), 0.0)
    out = maxpool2(out)
    out = conv1d(out, params["w2"], params["b2"], pad=2)
    out = jnp.maximum(bn_train(out, params["g2"], params["be2"]), 0.0)
    out = maxpool2(out)
    return out


if __name__ == "__main__":
    B, SEQ_LEN, L = 2, 8, 16   # PyTorch Conv1d NCW layout: (B, seq_len, L)

    key = jax.random.PRNGKey(0)
    x_key, p_key = jax.random.split(key)
    x = jax.random.normal(x_key, (B, SEQ_LEN, L), jnp.float32)
    params = init_params(SEQ_LEN, p_key)

    out = jax.block_until_ready(token_module_forward(x, params))
    assert out.shape == (B, SEQ_LEN, L // 4), out.shape

    ref = jax.block_until_ready(_reference_forward(x, params))
    np.testing.assert_allclose(
        np.asarray(out, np.float32), np.asarray(ref), rtol=2e-2, atol=2e-2
    )

    print("KERNEL_OK")
</pallas_src>

<mosaic_0001>
module attributes {stable_mosaic.version = 11 : i64} {
  func.func @_token_module_kernel(%arg0: memref<24x32xbf16, #tpu.memory_space<vmem>>, %arg1: memref<8x24xbf16, #tpu.memory_space<vmem>>, %arg2: memref<8x1xf32, #tpu.memory_space<vmem>>, %arg3: memref<8x1xf32, #tpu.memory_space<vmem>>, %arg4: memref<8x1xf32, #tpu.memory_space<vmem>>, %arg5: memref<8x40xbf16, #tpu.memory_space<vmem>>, %arg6: memref<8x1xf32, #tpu.memory_space<vmem>>, %arg7: memref<8x1xf32, #tpu.memory_space<vmem>>, %arg8: memref<8x1xf32, #tpu.memory_space<vmem>>, %arg9: memref<32x80xbf16, #tpu.memory_space<vmem>>, %arg10: memref<32x80xbf16, #tpu.memory_space<vmem>>, %arg11: memref<16x8xbf16, #tpu.memory_space<vmem>>, %arg12: memref<16x8xbf16, #tpu.memory_space<vmem>>, %arg13: memref<8x8xf32, #tpu.memory_space<vmem>>) attributes {dimension_semantics = [], scalar_prefetch = 0 : i64, scratch_operands = 0 : i64, tpu.core_type = #tpu.core_type<tc>} {
    %c0 = arith.constant 0 : index
    %c0_0 = arith.constant 0 : index
    %0 = vector.load %arg1[%c0, %c0_0] : memref<8x24xbf16, #tpu.memory_space<vmem>>, vector<8x24xbf16>
    %c0_1 = arith.constant 0 : index
    %c0_2 = arith.constant 0 : index
    %1 = vector.load %arg0[%c0_1, %c0_2] : memref<24x32xbf16, #tpu.memory_space<vmem>>, vector<24x32xbf16>
    %cst = arith.constant dense<0.000000e+00> : vector<8x32xf32>
    %2 = tpu.matmul %0, %1, %cst {dimension_numbers = #tpu.dot_dimension_numbers<[1], [0], [0], [1], [0, 0, 1, 1], [], []>} : vector<8x24xbf16>, vector<24x32xbf16>, vector<8x32xf32> -> vector<8x32xf32>
    %c0_3 = arith.constant 0 : index
    %c0_4 = arith.constant 0 : index
    %3 = vector.load %arg2[%c0_3, %c0_4] : memref<8x1xf32, #tpu.memory_space<vmem>>, vector<8x1xf32>
    %4 = vector.broadcast %3 : vector<8x1xf32> to vector<8x32xf32>
    %5 = arith.addf %2, %4 : vector<8x32xf32>
    %cst_5 = arith.constant dense<0.000000e+00> : vector<8xf32>
    %6 = vector.multi_reduction <add>, %5, %cst_5 [1] : vector<8x32xf32> to vector<8xf32>
    %7 = vector.shape_cast %6 : vector<8xf32> to vector<8x1xf32>
    %cst_6 = arith.constant 3.125000e-02 : f32
    %8 = vector.broadcast %cst_6 : f32 to vector<8x1xf32>
    %9 = arith.mulf %7, %8 : vector<8x1xf32>
    %10 = arith.mulf %5, %5 : vector<8x32xf32>
    %cst_7 = arith.constant dense<0.000000e+00> : vector<8xf32>
    %11 = vector.multi_reduction <add>, %10, %cst_7 [1] : vector<8x32xf32> to vector<8xf32>
    %12 = vector.shape_cast %11 : vector<8xf32> to vector<8x1xf32>
    %cst_8 = arith.constant 3.125000e-02 : f32
    %13 = vector.broadcast %cst_8 : f32 to vector<8x1xf32>
    %14 = arith.mulf %12, %13 : vector<8x1xf32>
    %15 = arith.mulf %9, %9 : vector<8x1xf32>
    %16 = arith.subf %14, %15 : vector<8x1xf32>
    %17 = vector.broadcast %9 : vector<8x1xf32> to vector<8x32xf32>
    %18 = arith.subf %5, %17 : vector<8x32xf32>
    %cst_9 = arith.constant 9.99999974E-6 : f32
    %19 = vector.broadcast %cst_9 : f32 to vector<8x1xf32>
    %20 = arith.addf %16, %19 : vector<8x1xf32>
    %21 = math.rsqrt %20 : vector<8x1xf32>
    %22 = vector.broadcast %21 : vector<8x1xf32> to vector<8x32xf32>
    %23 = arith.mulf %18, %22 : vector<8x32xf32>
    %c0_10 = arith.constant 0 : index
    %c0_11 = arith.constant 0 : index
    %24 = vector.load %arg3[%c0_10, %c0_11] : memref<8x1xf32, #tpu.memory_space<vmem>>, vector<8x1xf32>
    %25 = vector.broadcast %24 : vector<8x1xf32> to vector<8x32xf32>
    %26 = arith.mulf %23, %25 : vector<8x32xf32>
    %c0_12 = arith.constant 0 : index
    %c0_13 = arith.constant 0 : index
    %27 = vector.load %arg4[%c0_12, %c0_13] : memref<8x1xf32, #tpu.memory_space<vmem>>, vector<8x1xf32>
    %28 = vector.broadcast %27 : vector<8x1xf32> to vector<8x32xf32>
    %29 = arith.addf %26, %28 : vector<8x32xf32>
    %cst_14 = arith.constant 0.000000e+00 : f32
    %30 = vector.broadcast %cst_14 : f32 to vector<8x32xf32>
    %31 = arith.maximumf %29, %30 : vector<8x32xf32>
    %32 = arith.truncf %31 : vector<8x32xf32> to vector<8x32xbf16>
    %c0_15 = arith.constant 0 : index
    %c0_16 = arith.constant 0 : index
    %33 = vector.load %arg9[%c0_15, %c0_16] : memref<32x80xbf16, #tpu.memory_space<vmem>>, vector<32x80xbf16>
    %cst_17 = arith.constant dense<0.000000e+00> : vector<8x80xf32>
    %34 = tpu.matmul %32, %33, %cst_17 {dimension_numbers = #tpu.dot_dimension_numbers<[1], [0], [0], [1], [0, 0, 1, 1], [], []>} : vector<8x32xbf16>, vector<32x80xbf16>, vector<8x80xf32> -> vector<8x80xf32>
    %c0_18 = arith.constant 0 : index
    %c0_19 = arith.constant 0 : index
    %35 = vector.load %arg10[%c0_18, %c0_19] : memref<32x80xbf16, #tpu.memory_space<vmem>>, vector<32x80xbf16>
    %cst_20 = arith.constant dense<0.000000e+00> : vector<8x80xf32>
    %36 = tpu.matmul %32, %35, %cst_20 {dimension_numbers = #tpu.dot_dimension_numbers<[1], [0], [0], [1], [0, 0, 1, 1], [], []>} : vector<8x32xbf16>, vector<32x80xbf16>, vector<8x80xf32> -> vector<8x80xf32>
    %37 = arith.maximumf %34, %36 : vector<8x80xf32>
    %38 = arith.truncf %37 : vector<8x80xf32> to vector<8x80xbf16>
    %c0_21 = arith.constant 0 : index
    %c0_22 = arith.constant 0 : index
    %39 = vector.load %arg5[%c0_21, %c0_22] : memref<8x40xbf16, #tpu.memory_space<vmem>>, vector<8x40xbf16>
    %c0_23 = arith.constant 0 : index
    %c0_24 = arith.constant 0 : index
    %40 = vector.load %arg6[%c0_23, %c0_24] : memref<8x1xf32, #tpu.memory_space<vmem>>, vector<8x1xf32>
    %41 = vector.extract_strided_slice %39 {offsets = [0, 0], sizes = [8, 8], strides = [1, 1]} : vector<8x40xbf16> to vector<8x8xbf16>
    %42 = vector.extract_strided_slice %38 {offsets = [0, 0], sizes = [8, 16], strides = [1, 1]} : vector<8x80xbf16> to vector<8x16xbf16>
    %cst_25 = arith.constant dense<0.000000e+00> : vector<8x16xf32>
    %43 = tpu.matmul %41, %42, %cst_25 {dimension_numbers = #tpu.dot_dimension_numbers<[1], [0], [0], [1], [0, 0, 1, 1], [], []>} : vector<8x8xbf16>, vector<8x16xbf16>, vector<8x16xf32> -> vector<8x16xf32>
    %44 = vector.broadcast %40 : vector<8x1xf32> to vector<8x16xf32>
    %45 = arith.addf %44, %43 : vector<8x16xf32>
    %46 = vector.extract_strided_slice %39 {offsets = [0, 8], sizes = [8, 8], strides = [1, 1]} : vector<8x40xbf16> to vector<8x8xbf16>
    %47 = vector.extract_strided_slice %38 {offsets = [0, 16], sizes = [8, 16], strides = [1, 1]} : vector<8x80xbf16> to vector<8x16xbf16>
    %cst_26 = arith.constant dense<0.000000e+00> : vector<8x16xf32>
    %48 = tpu.matmul %46, %47, %cst_26 {dimension_numbers = #tpu.dot_dimension_numbers<[1], [0], [0], [1], [0, 0, 1, 1], [], []>} : vector<8x8xbf16>, vector<8x16xbf16>, vector<8x16xf32> -> vector<8x16xf32>
    %49 = arith.addf %45, %48 : vector<8x16xf32>
    %50 = vector.extract_strided_slice %39 {offsets = [0, 16], sizes = [8, 8], strides = [1, 1]} : vector<8x40xbf16> to vector<8x8xbf16>
    %51 = vector.extract_strided_slice %38 {offsets = [0, 32], sizes = [8, 16], strides = [1, 1]} : vector<8x80xbf16> to vector<8x16xbf16>
    %cst_27 = arith.constant dense<0.000000e+00> : vector<8x16xf32>
    %52 = tpu.matmul %50, %51, %cst_27 {dimension_numbers = #tpu.dot_dimension_numbers<[1], [0], [0], [1], [0, 0, 1, 1], [], []>} : vector<8x8xbf16>, vector<8x16xbf16>, vector<8x16xf32> -> vector<8x16xf32>
    %53 = arith.addf %49, %52 : vector<8x16xf32>
    %54 = vector.extract_strided_slice %39 {offsets = [0, 24], sizes = [8, 8], strides = [1, 1]} : vector<8x40xbf16> to vector<8x8xbf16>
    %55 = vector.extract_strided_slice %38 {offsets = [0, 48], sizes = [8, 16], strides = [1, 1]} : vector<8x80xbf16> to vector<8x16xbf16>
    %cst_28 = arith.constant dense<0.000000e+00> : vector<8x16xf32>
    %56 = tpu.matmul %54, %55, %cst_28 {dimension_numbers = #tpu.dot_dimension_numbers<[1], [0], [0], [1], [0, 0, 1, 1], [], []>} : vector<8x8xbf16>, vector<8x16xbf16>, vector<8x16xf32> -> vector<8x16xf32>
    %57 = arith.addf %53, %56 : vector<8x16xf32>
    %58 = vector.extract_strided_slice %39 {offsets = [0, 32], sizes = [8, 8], strides = [1, 1]} : vector<8x40xbf16> to vector<8x8xbf16>
    %59 = vector.extract_strided_slice %38 {offsets = [0, 64], sizes = [8, 16], strides = [1, 1]} : vector<8x80xbf16> to vector<8x16xbf16>
    %cst_29 = arith.constant dense<0.000000e+00> : vector<8x16xf32>
    %60 = tpu.matmul %58, %59, %cst_29 {dimension_numbers = #tpu.dot_dimension_numbers<[1], [0], [0], [1], [0, 0, 1, 1], [], []>} : vector<8x8xbf16>, vector<8x16xbf16>, vector<8x16xf32> -> vector<8x16xf32>
    %61 = arith.addf %57, %60 : vector<8x16xf32>
    %cst_30 = arith.constant dense<0.000000e+00> : vector<8xf32>
    %62 = vector.multi_reduction <add>, %61, %cst_30 [1] : vector<8x16xf32> to vector<8xf32>
    %63 = vector.shape_cast %62 : vector<8xf32> to vector<8x1xf32>
    %cst_31 = arith.constant 6.250000e-02 : f32
    %64 = vector.broadcast %cst_31 : f32 to vector<8x1xf32>
    %65 = arith.mulf %63, %64 : vector<8x1xf32>
    %66 = arith.mulf %61, %61 : vector<8x16xf32>
    %cst_32 = arith.constant dense<0.000000e+00> : vector<8xf32>
    %67 = vector.multi_reduction <add>, %66, %cst_32 [1] : vector<8x16xf32> to vector<8xf32>
    %68 = vector.shape_cast %67 : vector<8xf32> to vector<8x1xf32>
    %cst_33 = arith.constant 6.250000e-02 : f32
    %69 = vector.broadcast %cst_33 : f32 to vector<8x1xf32>
    %70 = arith.mulf %68, %69 : vector<8x1xf32>
    %71 = arith.mulf %65, %65 : vector<8x1xf32>
    %72 = arith.subf %70, %71 : vector<8x1xf32>
    %73 = vector.broadcast %65 : vector<8x1xf32> to vector<8x16xf32>
    %74 = arith.subf %61, %73 : vector<8x16xf32>
    %cst_34 = arith.constant 9.99999974E-6 : f32
    %75 = vector.broadcast %cst_34 : f32 to vector<8x1xf32>
    %76 = arith.addf %72, %75 : vector<8x1xf32>
    %77 = math.rsqrt %76 : vector<8x1xf32>
    %78 = vector.broadcast %77 : vector<8x1xf32> to vector<8x16xf32>
    %79 = arith.mulf %74, %78 : vector<8x16xf32>
    %c0_35 = arith.constant 0 : index
    %c0_36 = arith.constant 0 : index
    %80 = vector.load %arg7[%c0_35, %c0_36] : memref<8x1xf32, #tpu.memory_space<vmem>>, vector<8x1xf32>
    %81 = vector.broadcast %80 : vector<8x1xf32> to vector<8x16xf32>
    %82 = arith.mulf %79, %81 : vector<8x16xf32>
    %c0_37 = arith.constant 0 : index
    %c0_38 = arith.constant 0 : index
    %83 = vector.load %arg8[%c0_37, %c0_38] : memref<8x1xf32, #tpu.memory_space<vmem>>, vector<8x1xf32>
    %84 = vector.broadcast %83 : vector<8x1xf32> to vector<8x16xf32>
    %85 = arith.addf %82, %84 : vector<8x16xf32>
    %cst_39 = arith.constant 0.000000e+00 : f32
    %86 = vector.broadcast %cst_39 : f32 to vector<8x16xf32>
    %87 = arith.maximumf %85, %86 : vector<8x16xf32>
    %88 = arith.truncf %87 : vector<8x16xf32> to vector<8x16xbf16>
    %c0_40 = arith.constant 0 : index
    %c0_41 = arith.constant 0 : index
    %89 = vector.load %arg11[%c0_40, %c0_41] : memref<16x8xbf16, #tpu.memory_space<vmem>>, vector<16x8xbf16>
    %cst_42 = arith.constant dense<0.000000e+00> : vector<8x8xf32>
    %90 = tpu.matmul %88, %89, %cst_42 {dimension_numbers = #tpu.dot_dimension_numbers<[1], [0], [0], [1], [0, 0, 1, 1], [], []>} : vector<8x16xbf16>, vector<16x8xbf16>, vector<8x8xf32> -> vector<8x8xf32>
    %c0_43 = arith.constant 0 : index
    %c0_44 = arith.constant 0 : index
    %91 = vector.load %arg12[%c0_43, %c0_44] : memref<16x8xbf16, #tpu.memory_space<vmem>>, vector<16x8xbf16>
    %cst_45 = arith.constant dense<0.000000e+00> : vector<8x8xf32>
    %92 = tpu.matmul %88, %91, %cst_45 {dimension_numbers = #tpu.dot_dimension_numbers<[1], [0], [0], [1], [0, 0, 1, 1], [], []>} : vector<8x16xbf16>, vector<16x8xbf16>, vector<8x8xf32> -> vector<8x8xf32>
    %93 = arith.maximumf %90, %92 : vector<8x8xf32>
    %c0_46 = arith.constant 0 : index
    %c0_47 = arith.constant 0 : index
    %94 = vector.load %arg13[%c0_46, %c0_47] : memref<8x8xf32, #tpu.memory_space<vmem>>, vector<8x8xf32>
    tpu.vector_store %arg13[%c0_46, %c0_47], %93 {strides = array<i32>} : memref<8x8xf32, #tpu.memory_space<vmem>>, vector<8x8xf32>,
    return
  }
}

</mosaic_0001>

<llo_original>
// kernel: tpu_custom_call.1
$region0: #{tpu_custom_call.1}
  #allocation0 [shape = 'u32[]', space=smem, size = 0x4, offset = 0x4, fixed_abs, tag = 'smem constant byte address 0x4 - core index']
  #allocation1 [shape = 'u32[144,128]{1,0:T(1,128)}', space=vmem, size = 0x12000, scoped, tag = 'internal scratch']
  %s0 = inlined_call_operand.vmem [shape: bf16[24,32], index: 0, kind: input, shape index: {}]
  %s1 = inlined_call_operand.vmem [shape: bf16[8,24], index: 1, kind: input, shape index: {}]
  %s2 = inlined_call_operand.vmem [shape: f32[8,1], index: 2, kind: input, shape index: {}]
  %s3 = inlined_call_operand.vmem [shape: f32[8,1], index: 3, kind: input, shape index: {}]
  %s4 = inlined_call_operand.vmem [shape: f32[8,1], index: 4, kind: input, shape index: {}]
  %s5 = inlined_call_operand.vmem [shape: bf16[8,40], index: 5, kind: input, shape index: {}]
  %s6 = inlined_call_operand.vmem [shape: f32[8,1], index: 6, kind: input, shape index: {}]
  %s7 = inlined_call_operand.vmem [shape: f32[8,1], index: 7, kind: input, shape index: {}]
  %s8 = inlined_call_operand.vmem [shape: f32[8,1], index: 8, kind: input, shape index: {}]
  %s9 = inlined_call_operand.vmem [shape: bf16[32,80], index: 9, kind: input, shape index: {}]
  %s10 = inlined_call_operand.vmem [shape: bf16[32,80], index: 10, kind: input, shape index: {}]
  %s11 = inlined_call_operand.vmem [shape: bf16[16,8], index: 11, kind: input, shape index: {}]
  %s12 = inlined_call_operand.vmem [shape: bf16[16,8], index: 12, kind: input, shape index: {}]
  %s13 = inlined_call_operand.hbm [shape: f32[8,8], index: 13, kind: output, shape index: {}]
  %s14 = sld [smem:[#allocation0]]
  $region62: #{tpu_custom_call.1} parent=0
    _
  %s16 = ssub.s32 1, %s14
  %s17 = scalar_select 0, %s16, %s14
  $region1: #{tpu_custom_call.1} parent=0
    #allocation2 [shape = 'u8[4096]{0}', space=vmem, size = 0x1000, scoped, tag = 'output window, operand 0, single buffered']
    #allocation3 [shape = 's32[1]{0}', space=sflag, size = 0x4, scoped, tag = 'scoped memory for tpu_custom_call.1']
    %18 = vsyncpa [#allocation3], 0
    // Predicated region
    $region2: #{tpu_custom_call.1} parent=1 // pred_check
      _
    $region3: #{tpu_custom_call.1} parent=1 // pred_check_branch
      %20 = sbr.rel (0) target = $region5
    $region4: #{tpu_custom_call.1} parent=1 // pred_region
      _
    $region5: #{tpu_custom_call.1} parent=1 // pred_fallthru
      _
    // Predicated region
    $region6: #{tpu_custom_call.1} parent=1 // pred_check
      _
    $region7: #{tpu_custom_call.1} parent=1 // pred_check_branch
      %22 = sbr.rel (0) target = $region9
    $region8: #{tpu_custom_call.1} parent=1 // pred_region
      _
    $region9: #{tpu_custom_call.1} parent=1 // pred_fallthru
      _
    // Predicated region
    $region10: #{tpu_custom_call.1} parent=1 // pred_check
      _
    $region11: #{tpu_custom_call.1} parent=1 // pred_check_branch
      %24 = sbr.rel (0) target = $region13
    $region12: #{tpu_custom_call.1} parent=1 // pred_region
      _
    $region13: #{tpu_custom_call.1} parent=1 // pred_fallthru
      _
    // Predicated region
    $region14: #{tpu_custom_call.1} parent=1 // pred_check
      _
    $region15: #{tpu_custom_call.1} parent=1 // pred_check_branch
      %26 = sbr.rel (0) target = $region17
    $region16: #{tpu_custom_call.1} parent=1 // pred_region
      _
    $region17: #{tpu_custom_call.1} parent=1 // pred_fallthru
      _
    // Predicated region
    $region18: #{tpu_custom_call.1} parent=1 // pred_check
      _
    $region19: #{tpu_custom_call.1} parent=1 // pred_check_branch
      %28 = sbr.rel (0) target = $region21
    $region20: #{tpu_custom_call.1} parent=1 // pred_region
      _
    $region21: #{tpu_custom_call.1} parent=1 // pred_fallthru
      _
    // Predicated region
    $region22: #{tpu_custom_call.1} parent=1 // pred_check
      _
    $region23: #{tpu_custom_call.1} parent=1 // pred_check_branch
      %30 = sbr.rel (0) target = $region25
    $region24: #{tpu_custom_call.1} parent=1 // pred_region
      _
    $region25: #{tpu_custom_call.1} parent=1 // pred_fallthru
      _
    // Predicated region
    $region26: #{tpu_custom_call.1} parent=1 // pred_check
      _
    $region27: #{tpu_custom_call.1} parent=1 // pred_check_branch
      %32 = sbr.rel (0) target = $region29
    $region28: #{tpu_custom_call.1} parent=1 // pred_region
      _
    $region29: #{tpu_custom_call.1} parent=1 // pred_fallthru
      _
    // Predicated region
    $region30: #{tpu_custom_call.1} parent=1 // pred_check
      _
    $region31: #{tpu_custom_call.1} parent=1 // pred_check_branch
      %34 = sbr.rel (0) target = $region33
    $region32: #{tpu_custom_call.1} parent=1 // pred_region
      _
    $region33: #{tpu_custom_call.1} parent=1 // pred_fallthru
      _
    // Predicated region
    $region34: #{tpu_custom_call.1} parent=1 // pred_check
      _
    $region35: #{tpu_custom_call.1} parent=1 // pred_check_branch
      %36 = sbr.rel (0) target = $region37
    $region36: #{tpu_custom_call.1} parent=1 // pred_region
      _
    $region37: #{tpu_custom_call.1} parent=1 // pred_fallthru
      _
    // Predicated region
    $region38: #{tpu_custom_call.1} parent=1 // pred_check
      _
    $region39: #{tpu_custom_call.1} parent=1 // pred_check_branch
      %38 = sbr.rel (0) target = $region41
    $region40: #{tpu_custom_call.1} parent=1 // pred_region
      _
    $region41: #{tpu_custom_call.1} parent=1 // pred_fallthru
      _
    // Predicated region
    $region42: #{tpu_custom_call.1} parent=1 // pred_check
      _
    $region43: #{tpu_custom_call.1} parent=1 // pred_check_branch
      %40 = sbr.rel (0) target = $region45
    $region44: #{tpu_custom_call.1} parent=1 // pred_region
      _
    $region45: #{tpu_custom_call.1} parent=1 // pred_fallthru
      _
    // Predicated region
    $region46: #{tpu_custom_call.1} parent=1 // pred_check
      _
    $region47: #{tpu_custom_call.1} parent=1 // pred_check_branch
      %42 = sbr.rel (0) target = $region49
    $region48: #{tpu_custom_call.1} parent=1 // pred_region
      _
    $region49: #{tpu_custom_call.1} parent=1 // pred_fallthru
      _
    // Predicated region
    $region50: #{tpu_custom_call.1} parent=1 // pred_check
      _
    $region51: #{tpu_custom_call.1} parent=1 // pred_check_branch
      %44 = sbr.rel (0) target = $region53
    $region52: #{tpu_custom_call.1} parent=1 // pred_region
      _
    $region53: #{tpu_custom_call.1} parent=1 // pred_fallthru
      _
    %v46 = vld [vmem:[%s1] sm:$0xf]
    %v47 = vld [vmem:[%s0] sm:$0xf]
    %v48 = vld [vmem:[%s0 + $0x4] sm:$0xf]
    %v49 = vld [vmem:[%s0 + $0x8] sm:$0xf]
    %v50 = vld [vmem:[%s2] sm:$0xff]
    %52 = vset.pattern.permute.xlu0 0
    %53 = vperm.xlu0 %52, %v50
    %v54 = vpop.permute.xlu0 %53
    %v59 = vunpack.c.l.b16 %v47
    %v60 = vunpack.c.l.b16 %v48
    %v61 = vunpack.c.l.b16 %v49
    %v62 = vpack.c.b16 %v60, %v59
    %v63 = vpack.c.b16 %v61, %v61
    %vm65 = vcmask 195584
    %v67 = vsel %vm65, %v46, 0
    %vm69 = vcmask 1043456
    %v71 = vsel %vm69, %v63, 0
    %73 = vmatprep.subr.bf16.mxu0 0
    %74 = vmatpush1.bf16.msra.mxu0 %v62
    %75 = vmatprep.subr.bf16.mxu0 0
    %76 = vmatpush1.bf16.msra.mxu0 %v71
    %77 = vmatprep.subr.bf16.mxu0 0
    %78 = vmatpush1.bf16.msra.mxu0 0
    %79 = vmatprep.subr.bf16.mxu0 0
    %80 = vmatpush1.bf16.msra.mxu0 0
    %81 = vmatprep.subr.bf16.mxu0 0
    %82 = vmatpush1.bf16.msra.mxu0 0
    %83 = vmatprep.subr.bf16.mxu0 0
    %84 = vmatpush1.bf16.msra.mxu0 0
    %85 = vmatprep.subr.bf16.mxu0 0
    %86 = vmatpush1.bf16.msra.mxu0 0
    %87 = vmatprep.subr.bf16.mxu0 0
    %88 = vmatpush1.bf16.msra.mxu0 0
    %89 = vmatprep.subr.bf16.mxu0 0
    %90 = vmatpush1.bf16.msra.mxu0 0
    %91 = vmatprep.subr.bf16.mxu0 0
    %92 = vmatpush1.bf16.msra.mxu0 0
    %93 = vmatprep.subr.bf16.mxu0 0
    %94 = vmatpush1.bf16.msra.mxu0 0
    %95 = vmatprep.subr.bf16.mxu0 0
    %96 = vmatpush1.bf16.msra.mxu0 0
    %97 = vmatprep.subr.bf16.mxu0 0
    %98 = vmatpush1.bf16.msra.mxu0 0
    %99 = vmatprep.subr.bf16.mxu0 0
    %100 = vmatpush1.bf16.msra.mxu0 0
    %101 = vmatprep.subr.bf16.mxu0 0
    %102 = vmatpush1.bf16.msra.mxu0 0
    %103 = vmatprep.subr.bf16.mxu0 0
    %104 = vmatpush1.bf16.msra.mxu0 0
    %105 = vmatprep.mubr.bf16.mxu0 0
    %106 = vmatmul.mubr.bf16.gmra.mrb[0].mxu0 %v67
    %v107 = vpop.f32.mrb[0].mxu0
    %v108 = vadd.f32 %v54, %v107
    %v109 = vpop.f32.mrb[0].mxu0
    %v110 = vpop.f32.mrb[0].mxu0
    %v111 = vpop.f32.mrb[0].mxu0
    %112 = vdwg.mxu0
    %vm113 = vcmask 261120
    %v114 = vsel %vm113, %v108, 0.0
    %115 = vadd.xlane.f32.xlu0 %v114
    %v116 = vpop.xlane.xlu0 %115
    %v117 = vmul.f32 %v116, 0.03125
    %v118 = vmul.f32 %v108, %v108
    %v119 = vsel %vm113, %v118, 0.0
    %120 = vadd.xlane.f32.xlu0 %v119
    %v121 = vpop.xlane.xlu0 %120
    %v122 = vmul.f32 %v121, 0.03125
    %v123 = vmul.f32 %v117, %v117
    %v124 = vsub.f32 %v122, %v123
    %v125 = vsub.f32 %v108, %v117
    %v126 = vadd.f32 %v124, 1e-05
    %v127 = vrsqrt.pop %v126
    %v128 = vmul.f32 %v125, %v127
    %v129 = vld [vmem:[%s3] sm:$0xff]
    %131 = vset.pattern.permute.xlu0 0
    %132 = vperm.xlu0 %131, %v129
    %v133 = vpop.permute.xlu0 %132
    %v135 = vmul.f32 %v128, %v133
    %v136 = vld [vmem:[%s4] sm:$0xff]
    %138 = vset.pattern.permute.xlu0 0
    %139 = vperm.xlu0 %138, %v136
    %v140 = vpop.permute.xlu0 %139
    %v142 = vadd.f32 %v135, %v140
    %v143 = vmax.f32 %v142, 0.0
    %v144 = vpack.c.bf16 %v143, %v143
    %v145 = vld [vmem:[%s9] sm:$0xf]
    %v146 = vld [vmem:[%s9 + $0x4] sm:$0xf]
    %v147 = vld [vmem:[%s9 + $0x8] sm:$0xf]
    %v148 = vld [vmem:[%s9 + $0xc] sm:$0xf]
    %v153 = vunpack.c.l.b16 %v145
    %v154 = vunpack.c.l.b16 %v146
    %v155 = vunpack.c.l.b16 %v147
    %v156 = vunpack.c.l.b16 %v148
    %v157 = vpack.c.b16 %v154, %v153
    %v158 = vpack.c.b16 %v156, %v155
    %v162 = vsel %vm113, %v144, 0
    %164 = vmatprep.subr.bf16.mxu0 0
    %165 = vmatpush1.bf16.msra.mxu0 %v157
    %166 = vmatprep.subr.bf16.mxu0 0
    %167 = vmatpush1.bf16.msra.mxu0 %v158
    %168 = vmatprep.subr.bf16.mxu0 0
    %169 = vmatpush1.bf16.msra.mxu0 0
    %170 = vmatprep.subr.bf16.mxu0 0
    %171 = vmatpush1.bf16.msra.mxu0 0
    %172 = vmatprep.subr.bf16.mxu0 0
    %173 = vmatpush1.bf16.msra.mxu0 0
    %174 = vmatprep.subr.bf16.mxu0 0
    %175 = vmatpush1.bf16.msra.mxu0 0
    %176 = vmatprep.subr.bf16.mxu0 0
    %177 = vmatpush1.bf16.msra.mxu0 0
    %178 = vmatprep.subr.bf16.mxu0 0
    %179 = vmatpush1.bf16.msra.mxu0 0
    %180 = vmatprep.subr.bf16.mxu0 0
    %181 = vmatpush1.bf16.msra.mxu0 0
    %182 = vmatprep.subr.bf16.mxu0 0
    %183 = vmatpush1.bf16.msra.mxu0 0
    %184 = vmatprep.subr.bf16.mxu0 0
    %185 = vmatpush1.bf16.msra.mxu0 0
    %186 = vmatprep.subr.bf16.mxu0 0
    %187 = vmatpush1.bf16.msra.mxu0 0
    %188 = vmatprep.subr.bf16.mxu0 0
    %189 = vmatpush1.bf16.msra.mxu0 0
    %190 = vmatprep.subr.bf16.mxu0 0
    %191 = vmatpush1.bf16.msra.mxu0 0
    %192 = vmatprep.subr.bf16.mxu0 0
    %193 = vmatpush1.bf16.msra.mxu0 0
    %194 = vmatprep.subr.bf16.mxu0 0
    %195 = vmatpush1.bf16.msra.mxu0 0
    %196 = vmatprep.mubr.bf16.mxu0 0
    %197 = vmatmul.mubr.bf16.gmra.mrb[0].mxu0 %v162
    %v198 = vpop.f32.mrb[0].mxu0
    %v199 = vadd.f32 0.0, %v198
    %v200 = vpop.f32.mrb[0].mxu0
    %v201 = vpop.f32.mrb[0].mxu0
    %v202 = vpop.f32.mrb[0].mxu0
    %203 = vdwg.mxu0
    %v204 = vld [vmem:[%s10] sm:$0xf]
    %v205 = vld [vmem:[%s10 + $0x4] sm:$0xf]
    %v206 = vld [vmem:[%s10 + $0x8] sm:$0xf]
    %v207 = vld [vmem:[%s10 + $0xc] sm:$0xf]
    %v212 = vunpack.c.l.b16 %v204
    %v213 = vunpack.c.l.b16 %v205
    %v214 = vunpack.c.l.b16 %v206
    %v215 = vunpack.c.l.b16 %v207
    %v216 = vpack.c.b16 %v213, %v212
    %v217 = vpack.c.b16 %v215, %v214
    %220 = vmatprep.subr.bf16.mxu0 0
    %221 = vmatpush1.bf16.msra.mxu0 %v216
    %222 = vmatprep.subr.bf16.mxu0 0
    %223 = vmatpush1.bf16.msra.mxu0 %v217
    %224 = vmatprep.subr.bf16.mxu0 0
    %225 = vmatpush1.bf16.msra.mxu0 0
    %226 = vmatprep.subr.bf16.mxu0 0
    %227 = vmatpush1.bf16.msra.mxu0 0
    %228 = vmatprep.subr.bf16.mxu0 0
    %229 = vmatpush1.bf16.msra.mxu0 0
    %230 = vmatprep.subr.bf16.mxu0 0
    %231 = vmatpush1.bf16.msra.mxu0 0
    %232 = vmatprep.subr.bf16.mxu0 0
    %233 = vmatpush1.bf16.msra.mxu0 0
    %234 = vmatprep.subr.bf16.mxu0 0
    %235 = vmatpush1.bf16.msra.mxu0 0
    %236 = vmatprep.subr.bf16.mxu0 0
    %237 = vmatpush1.bf16.msra.mxu0 0
    %238 = vmatprep.subr.bf16.mxu0 0
    %239 = vmatpush1.bf16.msra.mxu0 0
    %240 = vmatprep.subr.bf16.mxu0 0
    %241 = vmatpush1.bf16.msra.mxu0 0
    %242 = vmatprep.subr.bf16.mxu0 0
    %243 = vmatpush1.bf16.msra.mxu0 0
    %244 = vmatprep.subr.bf16.mxu0 0
    %245 = vmatpush1.bf16.msra.mxu0 0
    %246 = vmatprep.subr.bf16.mxu0 0
    %247 = vmatpush1.bf16.msra.mxu0 0
    %248 = vmatprep.subr.bf16.mxu0 0
    %249 = vmatpush1.bf16.msra.mxu0 0
    %250 = vmatprep.subr.bf16.mxu0 0
    %251 = vmatpush1.bf16.msra.mxu0 0
    %252 = vmatprep.mubr.bf16.mxu0 0
    %253 = vmatmul.mubr.bf16.gmra.mrb[0].mxu0 %v162
    %v254 = vpop.f32.mrb[0].mxu0
    %v255 = vadd.f32 0.0, %v254
    %v256 = vpop.f32.mrb[0].mxu0
    %v257 = vpop.f32.mrb[0].mxu0
    %v258 = vpop.f32.mrb[0].mxu0
    %259 = vdwg.mxu0
    %v260 = vmax.f32 %v199, %v255
    %v261 = vpack.c.bf16 %v260, %v260
    %v262 = vld [vmem:[%s5] sm:$0xf]
    %v263 = vld [vmem:[%s6] sm:$0xff]
    %vm264 = vcmask 64512
    %v266 = vsel %vm264, %v262, 0
    %v269 = vsel %vm69, %v261, 0
    %271 = vmatprep.subr.bf16.mxu0 0
    %272 = vmatpush1.bf16.msra.mxu0 %v269
    %273 = vmatprep.subr.bf16.mxu0 0
    %274 = vmatpush1.bf16.msra.mxu0 0
    %275 = vmatprep.subr.bf16.mxu0 0
    %276 = vmatpush1.bf16.msra.mxu0 0
    %277 = vmatprep.subr.bf16.mxu0 0
    %278 = vmatpush1.bf16.msra.mxu0 0
    %279 = vmatprep.subr.bf16.mxu0 0
    %280 = vmatpush1.bf16.msra.mxu0 0
    %281 = vmatprep.subr.bf16.mxu0 0
    %282 = vmatpush1.bf16.msra.mxu0 0
    %283 = vmatprep.subr.bf16.mxu0 0
    %284 = vmatpush1.bf16.msra.mxu0 0
    %285 = vmatprep.subr.bf16.mxu0 0
    %286 = vmatpush1.bf16.msra.mxu0 0
    %287 = vmatprep.subr.bf16.mxu0 0
    %288 = vmatpush1.bf16.msra.mxu0 0
    %289 = vmatprep.subr.bf16.mxu0 0
    %290 = vmatpush1.bf16.msra.mxu0 0
    %291 = vmatprep.subr.bf16.mxu0 0
    %292 = vmatpush1.bf16.msra.mxu0 0
    %293 = vmatprep.subr.bf16.mxu0 0
    %294 = vmatpush1.bf16.msra.mxu0 0
    %295 = vmatprep.subr.bf16.mxu0 0
    %296 = vmatpush1.bf16.msra.mxu0 0
    %297 = vmatprep.subr.bf16.mxu0 0
    %298 = vmatpush1.bf16.msra.mxu0 0
    %299 = vmatprep.subr.bf16.mxu0 0
    %300 = vmatpush1.bf16.msra.mxu0 0
    %301 = vmatprep.subr.bf16.mxu0 0
    %302 = vmatpush1.bf16.msra.mxu0 0
    %303 = vmatprep.mubr.bf16.mxu0 0
    %304 = vmatmul.mubr.bf16.gmra.mrb[0].mxu0 %v266
    %v305 = vpop.f32.mrb[0].mxu0
    %v306 = vadd.f32 0.0, %v305
    %v307 = vpop.f32.mrb[0].mxu0
    %v308 = vpop.f32.mrb[0].mxu0
    %v309 = vpop.f32.mrb[0].mxu0
    %310 = vdwg.mxu0
    %312 = vset.pattern.permute.xlu0 0
    %313 = vperm.xlu0 %312, %v263
    %v314 = vpop.permute.xlu0 %313
    %v316 = vadd.f32 %v314, %v306
    %v318 = vunpack.c.l.b16 %v262
    %v319 = vpack.c.b16 %v318, %v318
    %320 = vrot.lane.b32.xlu0 %v319, 120
    %v321 = vpop.permute.xlu0 %320
    %323 = vrot.lane.b32.xlu0 %v261, 112
    %v324 = vpop.permute.xlu0 %323
    %v326 = vsel %vm264, %v321, 0
    %v329 = vsel %vm69, %v324, 0
    %331 = vmatprep.subr.bf16.mxu0 0
    %332 = vmatpush1.bf16.msra.mxu0 %v329
    %333 = vmatprep.subr.bf16.mxu0 0
    %334 = vmatpush1.bf16.msra.mxu0 0
    %335 = vmatprep.subr.bf16.mxu0 0
    %336 = vmatpush1.bf16.msra.mxu0 0
    %337 = vmatprep.subr.bf16.mxu0 0
    %338 = vmatpush1.bf16.msra.mxu0 0
    %339 = vmatprep.subr.bf16.mxu0 0
    %340 = vmatpush1.bf16.msra.mxu0 0
    %341 = vmatprep.subr.bf16.mxu0 0
    %342 = vmatpush1.bf16.msra.mxu0 0
    %343 = vmatprep.subr.bf16.mxu0 0
    %344 = vmatpush1.bf16.msra.mxu0 0
    %345 = vmatprep.subr.bf16.mxu0 0
    %346 = vmatpush1.bf16.msra.mxu0 0
    %347 = vmatprep.subr.bf16.mxu0 0
    %348 = vmatpush1.bf16.msra.mxu0 0
    %349 = vmatprep.subr.bf16.mxu0 0
    %350 = vmatpush1.bf16.msra.mxu0 0
    %351 = vmatprep.subr.bf16.mxu0 0
    %352 = vmatpush1.bf16.msra.mxu0 0
    %353 = vmatprep.subr.bf16.mxu0 0
    %354 = vmatpush1.bf16.msra.mxu0 0
    %355 = vmatprep.subr.bf16.mxu0 0
    %356 = vmatpush1.bf16.msra.mxu0 0
    %357 = vmatprep.subr.bf16.mxu0 0
    %358 = vmatpush1.bf16.msra.mxu0 0
    %359 = vmatprep.subr.bf16.mxu0 0
    %360 = vmatpush1.bf16.msra.mxu0 0
    %361 = vmatprep.subr.bf16.mxu0 0
    %362 = vmatpush1.bf16.msra.mxu0 0
    %363 = vmatprep.mubr.bf16.mxu0 0
    %364 = vmatmul.mubr.bf16.gmra.mrb[0].mxu0 %v326
    %v365 = vpop.f32.mrb[0].mxu0
    %v366 = vadd.f32 0.0, %v365
    %v367 = vpop.f32.mrb[0].mxu0
    %v368 = vpop.f32.mrb[0].mxu0
    %v369 = vpop.f32.mrb[0].mxu0
    %370 = vdwg.mxu0
    %v371 = vadd.f32 %v316, %v366
    %372 = vrot.lane.b32.xlu0 %v319, 112
    %v373 = vpop.permute.xlu0 %372
    %374 = vrot.lane.b32.xlu0 %v261, 96
    %v375 = vpop.permute.xlu0 %374
    %v377 = vsel %vm264, %v373, 0
    %v380 = vsel %vm69, %v375, 0
    %382 = vmatprep.subr.bf16.mxu0 0
    %383 = vmatpush1.bf16.msra.mxu0 %v380
    %384 = vmatprep.subr.bf16.mxu0 0
    %385 = vmatpush1.bf16.msra.mxu0 0
    %386 = vmatprep.subr.bf16.mxu0 0
    %387 = vmatpush1.bf16.msra.mxu0 0
    %388 = vmatprep.subr.bf16.mxu0 0
    %389 = vmatpush1.bf16.msra.mxu0 0
    %390 = vmatprep.subr.bf16.mxu0 0
    %391 = vmatpush1.bf16.msra.mxu0 0
    %392 = vmatprep.subr.bf16.mxu0 0
    %393 = vmatpush1.bf16.msra.mxu0 0
    %394 = vmatprep.subr.bf16.mxu0 0
    %395 = vmatpush1.bf16.msra.mxu0 0
    %396 = vmatprep.subr.bf16.mxu0 0
    %397 = vmatpush1.bf16.msra.mxu0 0
    %398 = vmatprep.subr.bf16.mxu0 0
    %399 = vmatpush1.bf16.msra.mxu0 0
    %400 = vmatprep.subr.bf16.mxu0 0
    %401 = vmatpush1.bf16.msra.mxu0 0
    %402 = vmatprep.subr.bf16.mxu0 0
    %403 = vmatpush1.bf16.msra.mxu0 0
    %404 = vmatprep.subr.bf16.mxu0 0
    %405 = vmatpush1.bf16.msra.mxu0 0
    %406 = vmatprep.subr.bf16.mxu0 0
    %407 = vmatpush1.bf16.msra.mxu0 0
    %408 = vmatprep.subr.bf16.mxu0 0
    %409 = vmatpush1.bf16.msra.mxu0 0
    %410 = vmatprep.subr.bf16.mxu0 0
    %411 = vmatpush1.bf16.msra.mxu0 0
    %412 = vmatprep.subr.bf16.mxu0 0
    %413 = vmatpush1.bf16.msra.mxu0 0
    %414 = vmatprep.mubr.bf16.mxu0 0
    %415 = vmatmul.mubr.bf16.gmra.mrb[0].mxu0 %v377
    %v416 = vpop.f32.mrb[0].mxu0
    %v417 = vadd.f32 0.0, %v416
    %v418 = vpop.f32.mrb[0].mxu0
    %v419 = vpop.f32.mrb[0].mxu0
    %v420 = vpop.f32.mrb[0].mxu0
    %421 = vdwg.mxu0
    %v422 = vadd.f32 %v371, %v417
    %423 = vrot.lane.b32.xlu0 %v319, 104
    %v424 = vpop.permute.xlu0 %423
    %425 = vrot.lane.b32.xlu0 %v261, 80
    %v426 = vpop.permute.xlu0 %425
    %v428 = vsel %vm264, %v424, 0
    %v431 = vsel %vm69, %v426, 0
    %433 = vmatprep.subr.bf16.mxu0 0
    %434 = vmatpush1.bf16.msra.mxu0 %v431
    %435 = vmatprep.subr.bf16.mxu0 0
    %436 = vmatpush1.bf16.msra.mxu0 0
    %437 = vmatprep.subr.bf16.mxu0 0
    %438 = vmatpush1.bf16.msra.mxu0 0
    %439 = vmatprep.subr.bf16.mxu0 0
    %440 = vmatpush1.bf16.msra.mxu0 0
    %441 = vmatprep.subr.bf16.mxu0 0
    %442 = vmatpush1.bf16.msra.mxu0 0
    %443 = vmatprep.subr.bf16.mxu0 0
    %444 = vmatpush1.bf16.msra.mxu0 0
    %445 = vmatprep.subr.bf16.mxu0 0
    %446 = vmatpush1.bf16.msra.mxu0 0
    %447 = vmatprep.subr.bf16.mxu0 0
    %448 = vmatpush1.bf16.msra.mxu0 0
    %449 = vmatprep.subr.bf16.mxu0 0
    %450 = vmatpush1.bf16.msra.mxu0 0
    %451 = vmatprep.subr.bf16.mxu0 0
    %452 = vmatpush1.bf16.msra.mxu0 0
    %453 = vmatprep.subr.bf16.mxu0 0
    %454 = vmatpush1.bf16.msra.mxu0 0
    %455 = vmatprep.subr.bf16.mxu0 0
    %456 = vmatpush1.bf16.msra.mxu0 0
    %457 = vmatprep.subr.bf16.mxu0 0
    %458 = vmatpush1.bf16.msra.mxu0 0
    %459 = vmatprep.subr.bf16.mxu0 0
    %460 = vmatpush1.bf16.msra.mxu0 0
    %461 = vmatprep.subr.bf16.mxu0 0
    %462 = vmatpush1.bf16.msra.mxu0 0
    %463 = vmatprep.subr.bf16.mxu0 0
    %464 = vmatpush1.bf16.msra.mxu0 0
    %465 = vmatprep.mubr.bf16.mxu0 0
    %466 = vmatmul.mubr.bf16.gmra.mrb[0].mxu0 %v428
    %v467 = vpop.f32.mrb[0].mxu0
    %v468 = vadd.f32 0.0, %v467
    %v469 = vpop.f32.mrb[0].mxu0
    %v470 = vpop.f32.mrb[0].mxu0
    %v471 = vpop.f32.mrb[0].mxu0
    %472 = vdwg.mxu0
    %v473 = vadd.f32 %v422, %v468
    %474 = vrot.lane.b32.xlu0 %v319, 96
    %v475 = vpop.permute.xlu0 %474
    %476 = vrot.lane.b32.xlu0 %v261, 64
    %v477 = vpop.permute.xlu0 %476
    %v479 = vsel %vm264, %v475, 0
    %v482 = vsel %vm69, %v477, 0
    %484 = vmatprep.subr.bf16.mxu0 0
    %485 = vmatpush1.bf16.msra.mxu0 %v482
    %486 = vmatprep.subr.bf16.mxu0 0
    %487 = vmatpush1.bf16.msra.mxu0 0
    %488 = vmatprep.subr.bf16.mxu0 0
    %489 = vmatpush1.bf16.msra.mxu0 0
    %490 = vmatprep.subr.bf16.mxu0 0
    %491 = vmatpush1.bf16.msra.mxu0 0
    %492 = vmatprep.subr.bf16.mxu0 0
    %493 = vmatpush1.bf16.msra.mxu0 0
    %494 = vmatprep.subr.bf16.mxu0 0
    %495 = vmatpush1.bf16.msra.mxu0 0
    %496 = vmatprep.subr.bf16.mxu0 0
    %497 = vmatpush1.bf16.msra.mxu0 0
    %498 = vmatprep.subr.bf16.mxu0 0
    %499 = vmatpush1.bf16.msra.mxu0 0
    %500 = vmatprep.subr.bf16.mxu0 0
    %501 = vmatpush1.bf16.msra.mxu0 0
    %502 = vmatprep.subr.bf16.mxu0 0
    %503 = vmatpush1.bf16.msra.mxu0 0
    %504 = vmatprep.subr.bf16.mxu0 0
    %505 = vmatpush1.bf16.msra.mxu0 0
    %506 = vmatprep.subr.bf16.mxu0 0
    %507 = vmatpush1.bf16.msra.mxu0 0
    %508 = vmatprep.subr.bf16.mxu0 0
    %509 = vmatpush1.bf16.msra.mxu0 0
    %510 = vmatprep.subr.bf16.mxu0 0
    %511 = vmatpush1.bf16.msra.mxu0 0
    %512 = vmatprep.subr.bf16.mxu0 0
    %513 = vmatpush1.bf16.msra.mxu0 0
    %514 = vmatprep.subr.bf16.mxu0 0
    %515 = vmatpush1.bf16.msra.mxu0 0
    %516 = vmatprep.mubr.bf16.mxu0 0
    %517 = vmatmul.mubr.bf16.gmra.mrb[0].mxu0 %v479
    %v518 = vpop.f32.mrb[0].mxu0
    %v519 = vadd.f32 0.0, %v518
    %v520 = vpop.f32.mrb[0].mxu0
    %v521 = vpop.f32.mrb[0].mxu0
    %v522 = vpop.f32.mrb[0].mxu0
    %523 = vdwg.mxu0
    %v524 = vadd.f32 %v473, %v519
    %vm525 = vcmask 130048
    %v526 = vsel %vm525, %v524, 0.0
    %527 = vadd.xlane.f32.xlu0 %v526
    %v528 = vpop.xlane.xlu0 %527
    %v529 = vmul.f32 %v528, 0.0625
    %v530 = vmul.f32 %v524, %v524
    %v531 = vsel %vm525, %v530, 0.0
    %532 = vadd.xlane.f32.xlu0 %v531
    %v533 = vpop.xlane.xlu0 %532
    %v534 = vmul.f32 %v533, 0.0625
    %v535 = vmul.f32 %v529, %v529
    %v536 = vsub.f32 %v534, %v535
    %v537 = vsub.f32 %v524, %v529
    %v538 = vadd.f32 %v536, 1e-05
    %v539 = vrsqrt.pop %v538
    %v540 = vmul.f32 %v537, %v539
    %v541 = vld [vmem:[%s7] sm:$0xff]
    %543 = vset.pattern.permute.xlu0 0
    %544 = vperm.xlu0 %543, %v541
    %v545 = vpop.permute.xlu0 %544
    %v547 = vmul.f32 %v540, %v545
    %v548 = vld [vmem:[%s8] sm:$0xff]
    %550 = vset.pattern.permute.xlu0 0
    %551 = vperm.xlu0 %550, %v548
    %v552 = vpop.permute.xlu0 %551
    %v554 = vadd.f32 %v547, %v552
    %v555 = vmax.f32 %v554, 0.0
    %v556 = vpack.c.bf16 %v555, %v555
    %v557 = vld [vmem:[%s11] sm:$0xf]
    %v558 = vld [vmem:[%s11 + $0x4] sm:$0xf]
    %v561 = vunpack.c.l.b16 %v557
    %v562 = vunpack.c.l.b16 %v558
    %v563 = vpack.c.b16 %v562, %v561
    %v566 = vsel %vm525, %v556, 0
    %568 = vmatprep.subr.bf16.mxu0 0
    %569 = vmatpush1.bf16.msra.mxu0 %v563
    %570 = vmatprep.subr.bf16.mxu0 0
    %571 = vmatpush1.bf16.msra.mxu0 0
    %572 = vmatprep.subr.bf16.mxu0 0
    %573 = vmatpush1.bf16.msra.mxu0 0
    %574 = vmatprep.subr.bf16.mxu0 0
    %575 = vmatpush1.bf16.msra.mxu0 0
    %576 = vmatprep.subr.bf16.mxu0 0
    %577 = vmatpush1.bf16.msra.mxu0 0
    %578 = vmatprep.subr.bf16.mxu0 0
    %579 = vmatpush1.bf16.msra.mxu0 0
    %580 = vmatprep.subr.bf16.mxu0 0
    %581 = vmatpush1.bf16.msra.mxu0 0
    %582 = vmatprep.subr.bf16.mxu0 0
    %583 = vmatpush1.bf16.msra.mxu0 0
    %584 = vmatprep.subr.bf16.mxu0 0
    %585 = vmatpush1.bf16.msra.mxu0 0
    %586 = vmatprep.subr.bf16.mxu0 0
    %587 = vmatpush1.bf16.msra.mxu0 0
    %588 = vmatprep.subr.bf16.mxu0 0
    %589 = vmatpush1.bf16.msra.mxu0 0
    %590 = vmatprep.subr.bf16.mxu0 0
    %591 = vmatpush1.bf16.msra.mxu0 0
    %592 = vmatprep.subr.bf16.mxu0 0
    %593 = vmatpush1.bf16.msra.mxu0 0
    %594 = vmatprep.subr.bf16.mxu0 0
    %595 = vmatpush1.bf16.msra.mxu0 0
    %596 = vmatprep.subr.bf16.mxu0 0
    %597 = vmatpush1.bf16.msra.mxu0 0
    %598 = vmatprep.subr.bf16.mxu0 0
    %599 = vmatpush1.bf16.msra.mxu0 0
    %600 = vmatprep.mubr.bf16.mxu0 0
    %601 = vmatmul.mubr.bf16.gmra.mrb[0].mxu0 %v566
    %v602 = vpop.f32.mrb[0].mxu0
    %v603 = vadd.f32 0.0, %v602
    %v604 = vpop.f32.mrb[0].mxu0
    %v605 = vpop.f32.mrb[0].mxu0
    %v606 = vpop.f32.mrb[0].mxu0
    %607 = vdwg.mxu0
    %v608 = vld [vmem:[%s12] sm:$0xf]
    %v609 = vld [vmem:[%s12 + $0x4] sm:$0xf]
    %v612 = vunpack.c.l.b16 %v608
    %v613 = vunpack.c.l.b16 %v609
    %v614 = vpack.c.b16 %v613, %v612
    %616 = vmatprep.subr.bf16.mxu0 0
    %617 = vmatpush1.bf16.msra.mxu0 %v614
    %618 = vmatprep.subr.bf16.mxu0 0
    %619 = vmatpush1.bf16.msra.mxu0 0
    %620 = vmatprep.subr.bf16.mxu0 0
    %621 = vmatpush1.bf16.msra.mxu0 0
    %622 = vmatprep.subr.bf16.mxu0 0
    %623 = vmatpush1.bf16.msra.mxu0 0
    %624 = vmatprep.subr.bf16.mxu0 0
    %625 = vmatpush1.bf16.msra.mxu0 0
    %626 = vmatprep.subr.bf16.mxu0 0
    %627 = vmatpush1.bf16.msra.mxu0 0
    %628 = vmatprep.subr.bf16.mxu0 0
    %629 = vmatpush1.bf16.msra.mxu0 0
    %630 = vmatprep.subr.bf16.mxu0 0
    %631 = vmatpush1.bf16.msra.mxu0 0
    %632 = vmatprep.subr.bf16.mxu0 0
    %633 = vmatpush1.bf16.msra.mxu0 0
    %634 = vmatprep.subr.bf16.mxu0 0
    %635 = vmatpush1.bf16.msra.mxu0 0
    %636 = vmatprep.subr.bf16.mxu0 0
    %637 = vmatpush1.bf16.msra.mxu0 0
    %638 = vmatprep.subr.bf16.mxu0 0
    %639 = vmatpush1.bf16.msra.mxu0 0
    %640 = vmatprep.subr.bf16.mxu0 0
    %641 = vmatpush1.bf16.msra.mxu0 0
    %642 = vmatprep.subr.bf16.mxu0 0
    %643 = vmatpush1.bf16.msra.mxu0 0
    %644 = vmatprep.subr.bf16.mxu0 0
    %645 = vmatpush1.bf16.msra.mxu0 0
    %646 = vmatprep.subr.bf16.mxu0 0
    %647 = vmatpush1.bf16.msra.mxu0 0
    %648 = vmatprep.mubr.bf16.mxu0 0
    %649 = vmatmul.mubr.bf16.gmra.mrb[0].mxu0 %v566
    %v650 = vpop.f32.mrb[0].mxu0
    %v651 = vadd.f32 0.0, %v650
    %v652 = vpop.f32.mrb[0].mxu0
    %v653 = vpop.f32.mrb[0].mxu0
    %v654 = vpop.f32.mrb[0].mxu0
    %655 = vdwg.mxu0
    %v656 = vmax.f32 %v603, %v651
    %657 = vst.msk [vmem:[#allocation2] sm:$0xff] %vm264, %v656
    // Predicated region
    $region54: #{tpu_custom_call.1} parent=1 // pred_check
      _
    $region55: #{tpu_custom_call.1} parent=1 // pred_check_branch
      %659 = sbr.rel (0) target = $region57
    $region56: #{tpu_custom_call.1} parent=1 // pred_region
      %s661 = ssub.s32 128, 128
      %662 = vsyncadd [#allocation3], %s661
      %s664 = sshll.u32 [#allocation2], 4
      %s665 = int_to_ptr.vmem [resolvable:$true] %s664
      %667 = dma.vmem_to_hbm [thread:$0]  %s665, 128, %s13, [#allocation3]
    $region57: #{tpu_custom_call.1} parent=1 // pred_fallthru
      _
    // Predicated region
    $region58: #{tpu_custom_call.1} parent=1 // pred_check
      _
    $region59: #{tpu_custom_call.1} parent=1 // pred_check_branch
      %669 = sbr.rel (0) target = $region61
    $region60: #{tpu_custom_call.1} parent=1 // pred_region
      %670 = dma.done [#allocation3], 128
    $region61: #{tpu_custom_call.1} parent=1 // pred_fallthru
      _
    %671 = vsyncpa [#allocation3], 1

</llo_original>
